<compile_context>
chip_gen: v6e
topology: v6e:2x2x1
jax: 0.10.0
libtpu: 0.0.40
codegen_flags: <defaults>
</compile_context>

<pallas_src>
import functools

import jax
import jax.numpy as jnp
from jax.experimental import pallas as pl
from jax.experimental.pallas import tpu as pltpu

HIDDEN = 128


def _round_up(x, m):
    return ((x + m - 1) // m) * m


def _mlp_kernel(x_ref, w1_ref, b1_ref, w2_ref, b2_ref, w3_ref, b3_ref, o_ref):
    # Entire 3-layer MLP hot path runs inside this kernel.
    # Dots run on the MXU in the weights' dtype (bf16 or f32) with f32
    # accumulation; bias add + ReLU stay f32 on the VPU.
    x = x_ref[...]
    h1 = jnp.dot(x, w1_ref[...], preferred_element_type=jnp.float32) + b1_ref[...]
    h1 = jnp.maximum(h1, 0.0)
    h2 = (
        jnp.dot(h1.astype(w2_ref.dtype), w2_ref[...],
                preferred_element_type=jnp.float32)
        + b2_ref[...]
    )
    h2 = jnp.maximum(h2, 0.0)
    out = (
        jnp.dot(h2.astype(w3_ref.dtype), w3_ref[...],
                preferred_element_type=jnp.float32)
        + b3_ref[...]
    )
    o_ref[...] = out.astype(o_ref.dtype)


@functools.partial(jax.jit, static_argnames=("block_b", "compute_dtype"))
def mlp_forward(x, w1, b1, w2, b2, w3, b3, *, block_b=256,
                compute_dtype=jnp.bfloat16):
    """x: (batch, input_dim) f32. Returns (batch, action_dim) f32."""
    batch, input_dim = x.shape
    hidden = w1.shape[1]
    action_dim = w3.shape[1]

    # ---- lane-pad the final layer to a multiple of 128 (unmasked stores) ----
    out_pad = _round_up(action_dim, 128)
    if out_pad != action_dim:
        w3p = jnp.zeros((hidden, out_pad), w3.dtype).at[:, :action_dim].set(w3)
        b3p = jnp.zeros((1, out_pad), b3.dtype).at[:, :action_dim].set(b3)
    else:
        w3p, b3p = w3, b3

    # ---- batch tiling: big MXU-friendly tile, pad batch instead of asserting ----
    block = min(block_b, max(_round_up(batch, 8), 8))
    batch_pad = _round_up(batch, block)
    if batch_pad != batch:
        x = jnp.pad(x, ((0, batch_pad - batch), (0, 0)))

    # ---- cast matmul inputs to the compute dtype (bf16 on v6e/v7x) ----
    xc = x.astype(compute_dtype)
    w1c = w1.astype(compute_dtype)
    w2c = w2.astype(compute_dtype)
    w3c = w3p.astype(compute_dtype)

    grid = (batch_pad // block,)

    flops = 2 * batch_pad * (input_dim * hidden + hidden * hidden + hidden * out_pad)
    bytes_accessed = (
        xc.size * xc.dtype.itemsize
        + sum(int(a.size) * a.dtype.itemsize for a in (w1c, w2c, w3c, b1, b2, b3p))
        + batch_pad * out_pad * 4
    )

    out = pl.pallas_call(
        _mlp_kernel,
        out_shape=jax.ShapeDtypeStruct((batch_pad, out_pad), jnp.float32),
        grid_spec=pltpu.PrefetchScalarGridSpec(
            num_scalar_prefetch=0,
            grid=grid,
            in_specs=[
                # per-grid-step batch tile of the input
                pl.BlockSpec((block, input_dim), lambda i: (i, 0)),
                # weights / biases: full arrays, resident across the grid
                # (constant index_map -> Mosaic keeps them resident, no re-DMA)
                pl.BlockSpec((input_dim, hidden), lambda i: (0, 0)),
                pl.BlockSpec((1, hidden), lambda i: (0, 0)),
                pl.BlockSpec((hidden, hidden), lambda i: (0, 0)),
                pl.BlockSpec((1, hidden), lambda i: (0, 0)),
                pl.BlockSpec((hidden, out_pad), lambda i: (0, 0)),
                pl.BlockSpec((1, out_pad), lambda i: (0, 0)),
            ],
            out_specs=pl.BlockSpec((block, out_pad), lambda i: (i, 0)),
        ),
        compiler_params=pltpu.CompilerParams(
            dimension_semantics=("parallel",),
        ),
        cost_estimate=pl.CostEstimate(
            flops=int(flops), transcendentals=0, bytes_accessed=int(bytes_accessed)
        ),
    )(xc, w1c, b1, w2c, b2, w3c, b3p)

    # strip the batch / lane padding
    return out[:batch, :action_dim]


def init_params(key, input_dim, action_dim):
    """Deterministic synthetic init (matches the nn.Linear shapes)."""
    k1, k2, k3, k4, k5, k6 = jax.random.split(key, 6)

    def lin(kw, kb, fan_in, fan_out):
        bound = 1.0 / jnp.sqrt(jnp.float32(fan_in))
        w = jax.random.uniform(kw, (fan_in, fan_out), jnp.float32, -bound, bound)
        b = jax.random.uniform(kb, (1, fan_out), jnp.float32, -bound, bound)
        return w, b

    w1, b1 = lin(k1, k2, input_dim, HIDDEN)
    w2, b2 = lin(k3, k4, HIDDEN, HIDDEN)
    w3, b3 = lin(k5, k6, HIDDEN, action_dim)
    return w1, b1, w2, b2, w3, b3


def model_forward(obs, params, state=None, info={}, *, compute_dtype=jnp.bfloat16):
    """Mirrors Model.forward: flatten obs to (batch, -1), run MLP, return (logits, state)."""
    obs = jnp.asarray(obs, dtype=jnp.float32)
    batch = obs.shape[0]
    x = obs.reshape(batch, -1)
    logits = mlp_forward(x, *params, compute_dtype=compute_dtype)
    return logits, state


if __name__ == "__main__":
    key = jax.random.PRNGKey(0)
    k_obs, k_par = jax.random.split(key)

    # small shapes; batch and action_dim deliberately NOT multiples of 8/128
    # to exercise the padding paths.
    batch, input_dim, action_dim = 12, 32, 6
    obs = jax.random.normal(k_obs, (batch, input_dim), dtype=jnp.float32)
    params = init_params(k_par, input_dim, action_dim)

    # pure-JAX f32 reference
    w1, b1, w2, b2, w3, b3 = params
    ref = jnp.maximum(obs @ w1 + b1, 0.0)
    ref = jnp.maximum(ref @ w2 + b2, 0.0)
    ref = ref @ w3 + b3

    # 1) exact-path check (f32 compute)
    logits_f32, state = model_forward(obs, params, compute_dtype=jnp.float32)
    jax.block_until_ready(logits_f32)
    assert logits_f32.shape == (batch, action_dim)
    assert state is None
    assert jnp.allclose(logits_f32, ref, atol=1e-4, rtol=1e-4)

    # 2) default bf16-compute path (v6e/v7x fast path), loose tolerance
    logits_bf16, _ = model_forward(obs, params)  # compute_dtype=bfloat16
    jax.block_until_ready(logits_bf16)
    assert logits_bf16.shape == (batch, action_dim)
    assert jnp.allclose(logits_bf16, ref, atol=5e-2, rtol=5e-2)

    print("KERNEL_OK")
</pallas_src>

<mosaic_0001>
module attributes {stable_mosaic.version = 11 : i64} {
  func.func @_mlp_kernel(%arg0: i32, %arg1: memref<16x32xf32, #tpu.memory_space<vmem>>, %arg2: memref<32x128xf32, #tpu.memory_space<vmem>>, %arg3: memref<1x128xf32, #tpu.memory_space<vmem>>, %arg4: memref<128x128xf32, #tpu.memory_space<vmem>>, %arg5: memref<1x128xf32, #tpu.memory_space<vmem>>, %arg6: memref<128x128xf32, #tpu.memory_space<vmem>>, %arg7: memref<1x128xf32, #tpu.memory_space<vmem>>, %arg8: memref<16x128xf32, #tpu.memory_space<vmem>>) attributes {dimension_semantics = [#tpu.dimension_semantics<parallel>], iteration_bounds = array<i64: 1>, scalar_prefetch = 0 : i64, scratch_operands = 0 : i64, tpu.core_type = #tpu.core_type<tc>, window_params = [{transform_indices = @transform_0, window_bounds = array<i64: 16, 32>}, {pipeline_mode = #tpu.pipeline_mode<synchronous>, transform_indices = @transform_1, window_bounds = array<i64: 32, 128>}, {pipeline_mode = #tpu.pipeline_mode<synchronous>, transform_indices = @transform_2, window_bounds = array<i64: 1, 128>}, {pipeline_mode = #tpu.pipeline_mode<synchronous>, transform_indices = @transform_3, window_bounds = array<i64: 128, 128>}, {pipeline_mode = #tpu.pipeline_mode<synchronous>, transform_indices = @transform_4, window_bounds = array<i64: 1, 128>}, {pipeline_mode = #tpu.pipeline_mode<synchronous>, transform_indices = @transform_5, window_bounds = array<i64: 128, 128>}, {pipeline_mode = #tpu.pipeline_mode<synchronous>, transform_indices = @transform_6, window_bounds = array<i64: 1, 128>}, {transform_indices = @transform_7, window_bounds = array<i64: 16, 128>}]} {
    %c0 = arith.constant 0 : index
    %c0_0 = arith.constant 0 : index
    %0 = vector.load %arg1[%c0, %c0_0] : memref<16x32xf32, #tpu.memory_space<vmem>>, vector<16x32xf32>
    %c0_1 = arith.constant 0 : index
    %c0_2 = arith.constant 0 : index
    %1 = vector.load %arg2[%c0_1, %c0_2] : memref<32x128xf32, #tpu.memory_space<vmem>>, vector<32x128xf32>
    %cst = arith.constant dense<0.000000e+00> : vector<16x128xf32>
    %2 = tpu.matmul %0, %1, %cst {dimension_numbers = #tpu.dot_dimension_numbers<[1], [0], [0], [1], [0, 0, 1, 1], [], []>} : vector<16x32xf32>, vector<32x128xf32>, vector<16x128xf32> -> vector<16x128xf32>
    %c0_3 = arith.constant 0 : index
    %c0_4 = arith.constant 0 : index
    %3 = vector.load %arg3[%c0_3, %c0_4] : memref<1x128xf32, #tpu.memory_space<vmem>>, vector<1x128xf32>
    %4 = vector.broadcast %3 : vector<1x128xf32> to vector<16x128xf32>
    %5 = arith.addf %2, %4 : vector<16x128xf32>
    %cst_5 = arith.constant 0.000000e+00 : f32
    %6 = vector.broadcast %cst_5 : f32 to vector<16x128xf32>
    %7 = arith.maximumf %5, %6 : vector<16x128xf32>
    %c0_6 = arith.constant 0 : index
    %c0_7 = arith.constant 0 : index
    %8 = vector.load %arg4[%c0_6, %c0_7] : memref<128x128xf32, #tpu.memory_space<vmem>>, vector<128x128xf32>
    %cst_8 = arith.constant dense<0.000000e+00> : vector<16x128xf32>
    %9 = tpu.matmul %7, %8, %cst_8 {dimension_numbers = #tpu.dot_dimension_numbers<[1], [0], [0], [1], [0, 0, 1, 1], [], []>} : vector<16x128xf32>, vector<128x128xf32>, vector<16x128xf32> -> vector<16x128xf32>
    %c0_9 = arith.constant 0 : index
    %c0_10 = arith.constant 0 : index
    %10 = vector.load %arg5[%c0_9, %c0_10] : memref<1x128xf32, #tpu.memory_space<vmem>>, vector<1x128xf32>
    %11 = vector.broadcast %10 : vector<1x128xf32> to vector<16x128xf32>
    %12 = arith.addf %9, %11 : vector<16x128xf32>
    %cst_11 = arith.constant 0.000000e+00 : f32
    %13 = vector.broadcast %cst_11 : f32 to vector<16x128xf32>
    %14 = arith.maximumf %12, %13 : vector<16x128xf32>
    %c0_12 = arith.constant 0 : index
    %c0_13 = arith.constant 0 : index
    %15 = vector.load %arg6[%c0_12, %c0_13] : memref<128x128xf32, #tpu.memory_space<vmem>>, vector<128x128xf32>
    %cst_14 = arith.constant dense<0.000000e+00> : vector<16x128xf32>
    %16 = tpu.matmul %14, %15, %cst_14 {dimension_numbers = #tpu.dot_dimension_numbers<[1], [0], [0], [1], [0, 0, 1, 1], [], []>} : vector<16x128xf32>, vector<128x128xf32>, vector<16x128xf32> -> vector<16x128xf32>
    %c0_15 = arith.constant 0 : index
    %c0_16 = arith.constant 0 : index
    %17 = vector.load %arg7[%c0_15, %c0_16] : memref<1x128xf32, #tpu.memory_space<vmem>>, vector<1x128xf32>
    %18 = vector.broadcast %17 : vector<1x128xf32> to vector<16x128xf32>
    %19 = arith.addf %16, %18 : vector<16x128xf32>
    %c0_17 = arith.constant 0 : index
    %c0_18 = arith.constant 0 : index
    %20 = vector.load %arg8[%c0_17, %c0_18] : memref<16x128xf32, #tpu.memory_space<vmem>>, vector<16x128xf32>
    tpu.vector_store %arg8[%c0_17, %c0_18], %19 {strides = array<i32>} : memref<16x128xf32, #tpu.memory_space<vmem>>, vector<16x128xf32>,
    return
  }
  func.func @transform_0(%arg0: i32) -> (i32, i32) {
    %c0_i32 = arith.constant 0 : i32
    %c0_i32_0 = arith.constant 0 : i32
    return %arg0, %c0_i32 : i32, i32
  }
  func.func @transform_1(%arg0: i32) -> (i32, i32) {
    %c0_i32 = arith.constant 0 : i32
    %c0_i32_0 = arith.constant 0 : i32
    %c0_i32_1 = arith.constant 0 : i32
    return %c0_i32, %c0_i32_0 : i32, i32
  }
  func.func @transform_2(%arg0: i32) -> (i32, i32) {
    %c0_i32 = arith.constant 0 : i32
    %c0_i32_0 = arith.constant 0 : i32
    %c0_i32_1 = arith.constant 0 : i32
    return %c0_i32, %c0_i32_0 : i32, i32
  }
  func.func @transform_3(%arg0: i32) -> (i32, i32) {
    %c0_i32 = arith.constant 0 : i32
    %c0_i32_0 = arith.constant 0 : i32
    %c0_i32_1 = arith.constant 0 : i32
    return %c0_i32, %c0_i32_0 : i32, i32
  }
  func.func @transform_4(%arg0: i32) -> (i32, i32) {
    %c0_i32 = arith.constant 0 : i32
    %c0_i32_0 = arith.constant 0 : i32
    %c0_i32_1 = arith.constant 0 : i32
    return %c0_i32, %c0_i32_0 : i32, i32
  }
  func.func @transform_5(%arg0: i32) -> (i32, i32) {
    %c0_i32 = arith.constant 0 : i32
    %c0_i32_0 = arith.constant 0 : i32
    %c0_i32_1 = arith.constant 0 : i32
    return %c0_i32, %c0_i32_0 : i32, i32
  }
  func.func @transform_6(%arg0: i32) -> (i32, i32) {
    %c0_i32 = arith.constant 0 : i32
    %c0_i32_0 = arith.constant 0 : i32
    %c0_i32_1 = arith.constant 0 : i32
    return %c0_i32, %c0_i32_0 : i32, i32
  }
  func.func @transform_7(%arg0: i32) -> (i32, i32) {
    %c0_i32 = arith.constant 0 : i32
    %c0_i32_0 = arith.constant 0 : i32
    return %arg0, %c0_i32 : i32, i32
  }
}

</mosaic_0001>

<llo_original>
// kernel: mlp_forward.1
$region0: #{mlp_forward.1}
  #allocation0 [shape = 'u32[]', space=smem, size = 0x4, offset = 0x4, fixed_abs, tag = 'smem constant byte address 0x4 - core index']
  #allocation1 [shape = 'u32[144,128]{1,0:T(1,128)}', space=vmem, size = 0x12000, scoped, tag = 'internal scratch']
  %s0 = inlined_call_operand.vmem [shape: f32[16,32], index: 0, kind: input, shape index: {}]
  %s1 = inlined_call_operand.vmem [shape: f32[32,128], index: 1, kind: input, shape index: {}]
  %s2 = inlined_call_operand.vmem [shape: f32[1,128], index: 2, kind: input, shape index: {}]
  %s3 = inlined_call_operand.vmem [shape: f32[128,128], index: 3, kind: input, shape index: {}]
  %s4 = inlined_call_operand.vmem [shape: f32[1,128], index: 4, kind: input, shape index: {}]
  %s5 = inlined_call_operand.vmem [shape: f32[128,128], index: 5, kind: input, shape index: {}]
  %s6 = inlined_call_operand.vmem [shape: f32[1,128], index: 6, kind: input, shape index: {}]
  %s7 = inlined_call_operand.vmem [shape: f32[16,128], index: 7, kind: output, shape index: {}]
  %s8 = sld [smem:[#allocation0]]
  $region38: #{mlp_forward.1} parent=0
    _
  %s10 = ssub.s32 1, %s8
  %s11 = scalar_select 0, %s10, %s8
  // Predicated region
  $region2: #{mlp_forward.1} parent=0 // pred_check
    _
  $region3: #{mlp_forward.1} parent=0 // pred_check_branch
    %13 = sbr.rel (0) target = $region5
  $region4: #{mlp_forward.1} parent=0 // pred_region
    _
  $region5: #{mlp_forward.1} parent=0 // pred_fallthru
    _
  // Predicated region
  $region6: #{mlp_forward.1} parent=0 // pred_check
    _
  $region7: #{mlp_forward.1} parent=0 // pred_check_branch
    %15 = sbr.rel (0) target = $region9
  $region8: #{mlp_forward.1} parent=0 // pred_region
    _
  $region9: #{mlp_forward.1} parent=0 // pred_fallthru
    _
  // Predicated region
  $region10: #{mlp_forward.1} parent=0 // pred_check
    _
  $region11: #{mlp_forward.1} parent=0 // pred_check_branch
    %17 = sbr.rel (0) target = $region13
  $region12: #{mlp_forward.1} parent=0 // pred_region
    _
  $region13: #{mlp_forward.1} parent=0 // pred_fallthru
    _
  // Predicated region
  $region14: #{mlp_forward.1} parent=0 // pred_check
    _
  $region15: #{mlp_forward.1} parent=0 // pred_check_branch
    %19 = sbr.rel (0) target = $region17
  $region16: #{mlp_forward.1} parent=0 // pred_region
    _
  $region17: #{mlp_forward.1} parent=0 // pred_fallthru
    _
  // Predicated region
  $region18: #{mlp_forward.1} parent=0 // pred_check
    _
  $region19: #{mlp_forward.1} parent=0 // pred_check_branch
    %21 = sbr.rel (0) target = $region21
  $region20: #{mlp_forward.1} parent=0 // pred_region
    _
  $region21: #{mlp_forward.1} parent=0 // pred_fallthru
    _
  // Predicated region
  $region22: #{mlp_forward.1} parent=0 // pred_check
    _
  $region23: #{mlp_forward.1} parent=0 // pred_check_branch
    %23 = sbr.rel (0) target = $region25
  $region24: #{mlp_forward.1} parent=0 // pred_region
    _
  $region25: #{mlp_forward.1} parent=0 // pred_fallthru
    _
  // Predicated region
  $region26: #{mlp_forward.1} parent=0 // pred_check
    _
  $region27: #{mlp_forward.1} parent=0 // pred_check_branch
    %25 = sbr.rel (0) target = $region29
  $region28: #{mlp_forward.1} parent=0 // pred_region
    _
  $region29: #{mlp_forward.1} parent=0 // pred_fallthru
    _
  %v26 = vld [vmem:[%s0] sm:$0xff]
  %v27 = vld [vmem:[%s0 + $0x8] sm:$0xff]
  %v28 = vld [vmem:[%s1] sm:$0xff]
  %v29 = vld [vmem:[%s1 + $0x8] sm:$0xff]
  %v30 = vld [vmem:[%s1 + $0x10] sm:$0xff]
  %v31 = vld [vmem:[%s1 + $0x18] sm:$0xff]
  %v32 = vld [vmem:[%s2] sm:$0x1]
  %v34 = vlaneseq
  %v35 = vshrl.u32 %v34, 7
  %v36 = vsub.s32 0, %v35
  %v37 = vrot.slane %v32, %v36
  %vm39 = vcmask 261120
  %v41 = vsel %vm39, %v26, 0
  %v44 = vsel %vm39, %v27, 0
  %46 = vmatprep.subr.mxu0 0.0
  %47 = vmatpush1.msra.mxu0 0.0
  %48 = vmatprep.subr.mxu0 0.0
  %49 = vmatpush1.msra.mxu0 0.0
  %50 = vmatprep.subr.mxu0 0.0
  %51 = vmatpush1.msra.mxu0 0.0
  %52 = vmatprep.subr.mxu0 0.0
  %53 = vmatpush1.msra.mxu0 0.0
  %54 = vmatprep.subr.mxu0 0.0
  %55 = vmatpush1.msra.mxu0 0.0
  %56 = vmatprep.subr.mxu0 0.0
  %57 = vmatpush1.msra.mxu0 0.0
  %58 = vmatprep.subr.mxu0 0.0
  %59 = vmatpush1.msra.mxu0 0.0
  %60 = vmatprep.subr.mxu0 0.0
  %61 = vmatpush1.msra.mxu0 0.0
  %62 = vmatprep.subr.mxu0 0.0
  %63 = vmatpush1.msra.mxu0 0.0
  %64 = vmatprep.subr.mxu0 0.0
  %65 = vmatpush1.msra.mxu0 0.0
  %66 = vmatprep.subr.mxu0 0.0
  %67 = vmatpush1.msra.mxu0 0.0
  %68 = vmatprep.subr.mxu0 0.0
  %69 = vmatpush1.msra.mxu0 0.0
  %70 = vmatprep.subr.mxu0 0.0
  %71 = vmatpush1.msra.mxu0 %v31
  %72 = vmatprep.subr.mxu0 0.0
  %73 = vmatpush1.msra.mxu0 %v30
  %74 = vmatprep.subr.mxu0 0.0
  %75 = vmatpush1.msra.mxu0 %v29
  %76 = vmatprep.subr.mxu0 0.0
  %77 = vmatpush1.msra.mxu0 %v28
  %78 = vmatprep.subr.mxu0 0.0
  %79 = vmatpush2.msra.mxu0 0.0
  %80 = vmatprep.subr.mxu0 0.0
  %81 = vmatpush2.msra.mxu0 0.0
  %82 = vmatprep.subr.mxu0 0.0
  %83 = vmatpush2.msra.mxu0 0.0
  %84 = vmatprep.subr.mxu0 0.0
  %85 = vmatpush2.msra.mxu0 0.0
  %86 = vmatprep.subr.mxu0 0.0
  %87 = vmatpush2.msra.mxu0 0.0
  %88 = vmatprep.subr.mxu0 0.0
  %89 = vmatpush2.msra.mxu0 0.0
  %90 = vmatprep.subr.mxu0 0.0
  %91 = vmatpush2.msra.mxu0 0.0
  %92 = vmatprep.subr.mxu0 0.0
  %93 = vmatpush2.msra.mxu0 0.0
  %94 = vmatprep.subr.mxu0 0.0
  %95 = vmatpush2.msra.mxu0 0.0
  %96 = vmatprep.subr.mxu0 0.0
  %97 = vmatpush2.msra.mxu0 0.0
  %98 = vmatprep.subr.mxu0 0.0
  %99 = vmatpush2.msra.mxu0 0.0
  %100 = vmatprep.subr.mxu0 0.0
  %101 = vmatpush2.msra.mxu0 0.0
  %102 = vmatprep.subr.mxu0 0.0
  %103 = vmatpush2.msra.mxu0 0.0
  %104 = vmatprep.subr.mxu0 0.0
  %105 = vmatpush2.msra.mxu0 0.0
  %106 = vmatprep.subr.mxu0 0.0
  %107 = vmatpush2.msra.mxu0 0.0
  %108 = vmatprep.subr.mxu0 0.0
  %109 = vmatpush2.msra.mxu0 0.0
  %110 = vmatprep.mubr.f32.mxu0 0.0
  %111 = vmatmul.mubr.f32.gmra.mxu0 %v41
  %v112 = vpop.f32.mrf.mxu0
  %v113 = vadd.f32 %v37, %v112
  %v114 = vpop.f32.mrf.mxu0
  %115 = vmatprep.mubr.f32.mxu0 0.0
  %116 = vmatmul.mubr.f32.gmra.mxu0 %v44
  %v117 = vpop.f32.mrf.mxu0
  %v118 = vadd.f32 %v37, %v117
  %v119 = vpop.f32.mrf.mxu0
  %120 = vdwg.mxu0
  %v121 = vmax.f32 %v113, 0.0
  %v122 = vmax.f32 %v118, 0.0
  %v123 = vld [vmem:[%s3] sm:$0xff]
  %v124 = vld [vmem:[%s3 + $0x8] sm:$0xff]
  %v125 = vld [vmem:[%s3 + $0x10] sm:$0xff]
  %v126 = vld [vmem:[%s3 + $0x18] sm:$0xff]
  %v127 = vld [vmem:[%s3 + $0x20] sm:$0xff]
  %v128 = vld [vmem:[%s3 + $0x28] sm:$0xff]
  %v129 = vld [vmem:[%s3 + $0x30] sm:$0xff]
  %v130 = vld [vmem:[%s3 + $0x38] sm:$0xff]
  %v131 = vld [vmem:[%s3 + $0x40] sm:$0xff]
  %v132 = vld [vmem:[%s3 + $0x48] sm:$0xff]
  %v133 = vld [vmem:[%s3 + $0x50] sm:$0xff]
  %v134 = vld [vmem:[%s3 + $0x58] sm:$0xff]
  %v135 = vld [vmem:[%s3 + $0x60] sm:$0xff]
  %v136 = vld [vmem:[%s3 + $0x68] sm:$0xff]
  %v137 = vld [vmem:[%s3 + $0x70] sm:$0xff]
  %v138 = vld [vmem:[%s3 + $0x78] sm:$0xff]
  %v139 = vld [vmem:[%s4] sm:$0x1]
  %v141 = vlaneseq
  %v142 = vshrl.u32 %v141, 7
  %v143 = vsub.s32 0, %v142
  %v144 = vrot.slane %v139, %v143
  %146 = vmatprep.subr.mxu0 0.0
  %147 = vmatpush1.msra.mxu0 %v138
  %148 = vmatprep.subr.mxu0 0.0
  %149 = vmatpush1.msra.mxu0 %v137
  %150 = vmatprep.subr.mxu0 0.0
  %151 = vmatpush1.msra.mxu0 %v136
  %152 = vmatprep.subr.mxu0 0.0
  %153 = vmatpush1.msra.mxu0 %v135
  %154 = vmatprep.subr.mxu0 0.0
  %155 = vmatpush1.msra.mxu0 %v134
  %156 = vmatprep.subr.mxu0 0.0
  %157 = vmatpush1.msra.mxu0 %v133
  %158 = vmatprep.subr.mxu0 0.0
  %159 = vmatpush1.msra.mxu0 %v132
  %160 = vmatprep.subr.mxu0 0.0
  %161 = vmatpush1.msra.mxu0 %v131
  %162 = vmatprep.subr.mxu0 0.0
  %163 = vmatpush1.msra.mxu0 %v130
  %164 = vmatprep.subr.mxu0 0.0
  %165 = vmatpush1.msra.mxu0 %v129
  %166 = vmatprep.subr.mxu0 0.0
  %167 = vmatpush1.msra.mxu0 %v128
  %168 = vmatprep.subr.mxu0 0.0
  %169 = vmatpush1.msra.mxu0 %v127
  %170 = vmatprep.subr.mxu0 0.0
  %171 = vmatpush1.msra.mxu0 %v126
  %172 = vmatprep.subr.mxu0 0.0
  %173 = vmatpush1.msra.mxu0 %v125
  %174 = vmatprep.subr.mxu0 0.0
  %175 = vmatpush1.msra.mxu0 %v124
  %176 = vmatprep.subr.mxu0 0.0
  %177 = vmatpush1.msra.mxu0 %v123
  %178 = vmatprep.subr.mxu0 0.0
  %179 = vmatpush2.msra.mxu0 0.0
  %180 = vmatprep.subr.mxu0 0.0
  %181 = vmatpush2.msra.mxu0 0.0
  %182 = vmatprep.subr.mxu0 0.0
  %183 = vmatpush2.msra.mxu0 0.0
  %184 = vmatprep.subr.mxu0 0.0
  %185 = vmatpush2.msra.mxu0 0.0
  %186 = vmatprep.subr.mxu0 0.0
  %187 = vmatpush2.msra.mxu0 0.0
  %188 = vmatprep.subr.mxu0 0.0
  %189 = vmatpush2.msra.mxu0 0.0
  %190 = vmatprep.subr.mxu0 0.0
  %191 = vmatpush2.msra.mxu0 0.0
  %192 = vmatprep.subr.mxu0 0.0
  %193 = vmatpush2.msra.mxu0 0.0
  %194 = vmatprep.subr.mxu0 0.0
  %195 = vmatpush2.msra.mxu0 0.0
  %196 = vmatprep.subr.mxu0 0.0
  %197 = vmatpush2.msra.mxu0 0.0
  %198 = vmatprep.subr.mxu0 0.0
  %199 = vmatpush2.msra.mxu0 0.0
  %200 = vmatprep.subr.mxu0 0.0
  %201 = vmatpush2.msra.mxu0 0.0
  %202 = vmatprep.subr.mxu0 0.0
  %203 = vmatpush2.msra.mxu0 0.0
  %204 = vmatprep.subr.mxu0 0.0
  %205 = vmatpush2.msra.mxu0 0.0
  %206 = vmatprep.subr.mxu0 0.0
  %207 = vmatpush2.msra.mxu0 0.0
  %208 = vmatprep.subr.mxu0 0.0
  %209 = vmatpush2.msra.mxu0 0.0
  %210 = vmatprep.mubr.f32.mxu0 0.0
  %211 = vmatmul.mubr.f32.gmra.mxu0 %v121
  %v212 = vpop.f32.mrf.mxu0
  %v213 = vadd.f32 %v144, %v212
  %v214 = vpop.f32.mrf.mxu0
  %215 = vmatprep.mubr.f32.mxu0 0.0
  %216 = vmatmul.mubr.f32.gmra.mxu0 %v122
  %v217 = vpop.f32.mrf.mxu0
  %v218 = vadd.f32 %v144, %v217
  %v219 = vpop.f32.mrf.mxu0
  %220 = vdwg.mxu0
  %v221 = vmax.f32 %v213, 0.0
  %v222 = vmax.f32 %v218, 0.0
  %v223 = vld [vmem:[%s5] sm:$0xff]
  %v224 = vld [vmem:[%s5 + $0x8] sm:$0xff]
  %v225 = vld [vmem:[%s5 + $0x10] sm:$0xff]
  %v226 = vld [vmem:[%s5 + $0x18] sm:$0xff]
  %v227 = vld [vmem:[%s5 + $0x20] sm:$0xff]
  %v228 = vld [vmem:[%s5 + $0x28] sm:$0xff]
  %v229 = vld [vmem:[%s5 + $0x30] sm:$0xff]
  %v230 = vld [vmem:[%s5 + $0x38] sm:$0xff]
  %v231 = vld [vmem:[%s5 + $0x40] sm:$0xff]
  %v232 = vld [vmem:[%s5 + $0x48] sm:$0xff]
  %v233 = vld [vmem:[%s5 + $0x50] sm:$0xff]
  %v234 = vld [vmem:[%s5 + $0x58] sm:$0xff]
  %v235 = vld [vmem:[%s5 + $0x60] sm:$0xff]
  %v236 = vld [vmem:[%s5 + $0x68] sm:$0xff]
  %v237 = vld [vmem:[%s5 + $0x70] sm:$0xff]
  %v238 = vld [vmem:[%s5 + $0x78] sm:$0xff]
  %v239 = vld [vmem:[%s6] sm:$0x1]
  %v241 = vlaneseq
  %v242 = vshrl.u32 %v241, 7
  %v243 = vsub.s32 0, %v242
  %v244 = vrot.slane %v239, %v243
  %246 = vmatprep.subr.mxu0 0.0
  %247 = vmatpush1.msra.mxu0 %v238
  %248 = vmatprep.subr.mxu0 0.0
  %249 = vmatpush1.msra.mxu0 %v237
  %250 = vmatprep.subr.mxu0 0.0
  %251 = vmatpush1.msra.mxu0 %v236
  %252 = vmatprep.subr.mxu0 0.0
  %253 = vmatpush1.msra.mxu0 %v235
  %254 = vmatprep.subr.mxu0 0.0
  %255 = vmatpush1.msra.mxu0 %v234
  %256 = vmatprep.subr.mxu0 0.0
  %257 = vmatpush1.msra.mxu0 %v233
  %258 = vmatprep.subr.mxu0 0.0
  %259 = vmatpush1.msra.mxu0 %v232
  %260 = vmatprep.subr.mxu0 0.0
  %261 = vmatpush1.msra.mxu0 %v231
  %262 = vmatprep.subr.mxu0 0.0
  %263 = vmatpush1.msra.mxu0 %v230
  %264 = vmatprep.subr.mxu0 0.0
  %265 = vmatpush1.msra.mxu0 %v229
  %266 = vmatprep.subr.mxu0 0.0
  %267 = vmatpush1.msra.mxu0 %v228
  %268 = vmatprep.subr.mxu0 0.0
  %269 = vmatpush1.msra.mxu0 %v227
  %270 = vmatprep.subr.mxu0 0.0
  %271 = vmatpush1.msra.mxu0 %v226
  %272 = vmatprep.subr.mxu0 0.0
  %273 = vmatpush1.msra.mxu0 %v225
  %274 = vmatprep.subr.mxu0 0.0
  %275 = vmatpush1.msra.mxu0 %v224
  %276 = vmatprep.subr.mxu0 0.0
  %277 = vmatpush1.msra.mxu0 %v223
  %278 = vmatprep.subr.mxu0 0.0
  %279 = vmatpush2.msra.mxu0 0.0
  %280 = vmatprep.subr.mxu0 0.0
  %281 = vmatpush2.msra.mxu0 0.0
  %282 = vmatprep.subr.mxu0 0.0
  %283 = vmatpush2.msra.mxu0 0.0
  %284 = vmatprep.subr.mxu0 0.0
  %285 = vmatpush2.msra.mxu0 0.0
  %286 = vmatprep.subr.mxu0 0.0
  %287 = vmatpush2.msra.mxu0 0.0
  %288 = vmatprep.subr.mxu0 0.0
  %289 = vmatpush2.msra.mxu0 0.0
  %290 = vmatprep.subr.mxu0 0.0
  %291 = vmatpush2.msra.mxu0 0.0
  %292 = vmatprep.subr.mxu0 0.0
  %293 = vmatpush2.msra.mxu0 0.0
  %294 = vmatprep.subr.mxu0 0.0
  %295 = vmatpush2.msra.mxu0 0.0
  %296 = vmatprep.subr.mxu0 0.0
  %297 = vmatpush2.msra.mxu0 0.0
  %298 = vmatprep.subr.mxu0 0.0
  %299 = vmatpush2.msra.mxu0 0.0
  %300 = vmatprep.subr.mxu0 0.0
  %301 = vmatpush2.msra.mxu0 0.0
  %302 = vmatprep.subr.mxu0 0.0
  %303 = vmatpush2.msra.mxu0 0.0
  %304 = vmatprep.subr.mxu0 0.0
  %305 = vmatpush2.msra.mxu0 0.0
  %306 = vmatprep.subr.mxu0 0.0
  %307 = vmatpush2.msra.mxu0 0.0
  %308 = vmatprep.subr.mxu0 0.0
  %309 = vmatpush2.msra.mxu0 0.0
  %310 = vmatprep.mubr.f32.mxu0 0.0
  %311 = vmatmul.mubr.f32.gmra.mxu0 %v221
  %v312 = vpop.f32.mrf.mxu0
  %v313 = vadd.f32 %v244, %v312
  %v314 = vpop.f32.mrf.mxu0
  %315 = vmatprep.mubr.f32.mxu0 0.0
  %316 = vmatmul.mubr.f32.gmra.mxu0 %v222
  %v317 = vpop.f32.mrf.mxu0
  %v318 = vadd.f32 %v244, %v317
  %v319 = vpop.f32.mrf.mxu0
  %320 = vdwg.mxu0
  %321 = vst [vmem:[%s7] sm:$0xff] %v313
  %322 = vst [vmem:[%s7 + $0x8] sm:$0xff] %v318
  // Predicated region
  $region30: #{mlp_forward.1} parent=0 // pred_check
    _
  $region31: #{mlp_forward.1} parent=0 // pred_check_branch
    %324 = sbr.rel (0) target = $region33
  $region32: #{mlp_forward.1} parent=0 // pred_region
    _
  $region33: #{mlp_forward.1} parent=0 // pred_fallthru
    _
  // Predicated region
  $region34: #{mlp_forward.1} parent=0 // pred_check
    _
  $region35: #{mlp_forward.1} parent=0 // pred_check_branch
    %326 = sbr.rel (0) target = $region37
  $region36: #{mlp_forward.1} parent=0 // pred_region
    _
  $region37: #{mlp_forward.1} parent=0 // pred_fallthru
    _

</llo_original>
